<compile_context>
chip_gen: v7x
topology: tpu7x:2x2x1
jax: 0.10.0
libtpu: 0.0.40
codegen_flags: <defaults>
</compile_context>

<pallas_src>
import functools

import jax
import jax.numpy as jnp
from jax.experimental import pallas as pl
from jax.experimental.pallas import tpu as pltpu

INFINITY_NUMBER = 1e12  # `constant.INFINITY_NUMBER` in the reference repo


# ----------------------------------------------------------------------------
# kernel
# ----------------------------------------------------------------------------
def bert_classifier_kernel(fill_ref, h_ref, w_ref, b_ref, out_ref,
                           acc_ref, cnt_ref, *, pool_type, seq_len):
    """Fused masked pooling (over seq blocks) + linear classifier.

    fill_ref : (B_tile, S_tile) f32, 1.0 where the position is masked out
    h_ref    : (B_tile, S_tile, D) f32/bf16 hidden states
    w_ref    : (D, C_pad) f32 classifier weight (transposed, lane-padded)
    b_ref    : (1, C_pad) f32 classifier bias (lane-padded)
    out_ref  : (B_tile, C_pad) f32 logits
    acc_ref  : (B_tile, D) f32 scratch  -- running max / running sum
    cnt_ref  : (B_tile, 1) f32 scratch  -- running count of masked positions
    """
    s_idx = pl.program_id(1)
    n_seq = pl.num_programs(1)

    # ---- init accumulators at the first seq block of each batch tile -------
    @pl.when(s_idx == 0)
    def _():
        if pool_type == 'max':
            acc_ref[...] = jnp.full_like(acc_ref, -INFINITY_NUMBER)
        else:
            acc_ref[...] = jnp.zeros_like(acc_ref)
        cnt_ref[...] = jnp.zeros_like(cnt_ref)

    fill = fill_ref[...]                              # (B_t, S_t) f32 {0,1}
    h = h_ref[...].astype(jnp.float32)                # widen bf16 -> f32
    fill3 = fill[:, :, None]                          # (B_t, S_t, 1)

    # ---- per-seq-block reduction into the scratch accumulator --------------
    if pool_type == 'max':
        hm = jnp.where(fill3 > 0.5, jnp.float32(-INFINITY_NUMBER), h)
        acc_ref[...] = jnp.maximum(acc_ref[...], jnp.max(hm, axis=1))
    else:  # 'avg' and 'sum' both accumulate a masked sum
        hm = h * (1.0 - fill3)
        acc_ref[...] += jnp.sum(hm, axis=1)
        if pool_type == 'avg':
            cnt_ref[...] += jnp.sum(fill, axis=1, keepdims=True)

    # ---- finalize: single MXU matmul per batch tile -------------------------
    @pl.when(s_idx == n_seq - 1)
    def _():
        pooled = acc_ref[...]                                      # (B_t, D)
        if pool_type == 'avg':
            # matches torch: mask.size(1) - mask.float().sum(1)
            denom = jnp.float32(seq_len) - cnt_ref[...]            # (B_t, 1)
            pooled = pooled / denom
        logits = jnp.dot(pooled, w_ref[...],
                         preferred_element_type=jnp.float32)       # (B_t, Cpad)
        out_ref[...] = logits + b_ref[...]


# ----------------------------------------------------------------------------
# tiling helpers
# ----------------------------------------------------------------------------
def _choose_tiles(B, S, D, h_itemsize):
    # batch tile: sublane dim of masks/out -> multiple of 8, or the full B
    b_tile = 8 if (B >= 8 and B % 8 == 0) else B
    # seq tile: lane dim of the fill mask -> multiple of 128, or the full S
    s_tile = S
    for cand in (512, 256, 128):
        if S % cand == 0:
            s_tile = cand
            break
    # keep the double-buffered h block comfortably inside v7x's scoped VMEM
    while b_tile * s_tile * D * h_itemsize > 8 * 1024 * 1024 and s_tile % 256 == 0:
        s_tile //= 2
    return b_tile, s_tile


# ----------------------------------------------------------------------------
# wrapper
# ----------------------------------------------------------------------------
def bert_classifier(h, masks, subj_pos, obj_pos, weight, bias, pooling='max'):
    """h: (B,S,D) f32 or bf16; masks/subj_pos/obj_pos: (B,S) int;
    weight: torch-style (C, D) Linear weight; bias: (C,). Returns (B, C) f32."""
    B, S, D = h.shape
    C = weight.shape[0]
    C_pad = max(128, ((C + 127) // 128) * 128)        # lane-dense output / MXU N

    if not jnp.issubdtype(jnp.asarray(h).dtype, jnp.floating):
        h = jnp.asarray(h, jnp.float32)
    h = jnp.asarray(h)

    # fuse the three (B,S) masks into one f32 fill mask (1.0 = masked out).
    masks = jnp.asarray(masks, jnp.int32)
    subj_pos = jnp.asarray(subj_pos, jnp.int32)
    obj_pos = jnp.asarray(obj_pos, jnp.int32)
    any_hit = (masks == 0) | (subj_pos == 1000) | (obj_pos == 1000)
    fill = jnp.logical_not(any_hit).astype(jnp.float32)            # (B, S)

    # pre-transpose + zero-pad classifier params to a full 128-lane tile.
    w_pad = jnp.zeros((D, C_pad), jnp.float32).at[:, :C].set(
        jnp.asarray(weight, jnp.float32).T)
    b_pad = jnp.zeros((1, C_pad), jnp.float32).at[:, :C].set(
        jnp.asarray(bias, jnp.float32).reshape(1, C))

    b_tile, s_tile = _choose_tiles(B, S, D, h.dtype.itemsize)
    grid = (B // b_tile, S // s_tile)

    kernel = functools.partial(bert_classifier_kernel,
                               pool_type=pooling, seq_len=S)

    logits_pad = pl.pallas_call(
        kernel,
        out_shape=jax.ShapeDtypeStruct((B, C_pad), jnp.float32),
        grid_spec=pltpu.PrefetchScalarGridSpec(
            num_scalar_prefetch=0,
            grid=grid,
            in_specs=[
                # fused fill mask, tiled over (batch, seq)
                pl.BlockSpec((b_tile, s_tile), lambda b, s: (b, s)),
                # hidden states, tiled over (batch, seq), full D
                pl.BlockSpec((b_tile, s_tile, D), lambda b, s: (b, s, 0)),
                # weight / bias: constant block index -> resident in VMEM
                pl.BlockSpec((D, C_pad), lambda b, s: (0, 0)),
                pl.BlockSpec((1, C_pad), lambda b, s: (0, 0)),
            ],
            out_specs=pl.BlockSpec((b_tile, C_pad), lambda b, s: (b, 0)),
            scratch_shapes=[
                pltpu.VMEM((b_tile, D), jnp.float32),   # pooled accumulator
                pltpu.VMEM((b_tile, 1), jnp.float32),   # masked-position count
            ],
        ),
        compiler_params=pltpu.CompilerParams(
            dimension_semantics=("parallel", "arbitrary"),
            vmem_limit_bytes=32 * 1024 * 1024,
        ),
    )(fill, h, w_pad, b_pad)

    return logits_pad[:, :C]


# ----------------------------------------------------------------------------
# pure-JAX reference (mirrors the PyTorch forward)
# ----------------------------------------------------------------------------
def _reference(h, masks, subj_pos, obj_pos, weight, bias, pooling='max'):
    subj_mask = (subj_pos == 1000)[:, :, None]
    obj_mask = (obj_pos == 1000)[:, :, None]
    out_mask = (masks == 0)[:, :, None] | subj_mask | obj_mask
    fill = ~out_mask                                   # out_mask.eq(0)
    h = jnp.asarray(h, jnp.float32)
    if pooling == 'max':
        hm = jnp.where(fill, -INFINITY_NUMBER, h)
        cls_out = jnp.max(hm, axis=1)
    elif pooling == 'avg':
        hm = jnp.where(fill, 0.0, h)
        denom = masks.shape[1] - jnp.sum(fill.astype(jnp.float32), axis=1)
        cls_out = jnp.sum(hm, axis=1) / denom
    else:
        hm = jnp.where(fill, 0.0, h)
        cls_out = jnp.sum(hm, axis=1)
    return cls_out @ weight.T + bias


if __name__ == "__main__":
    B, S, D = 2, 8, 1024          # in_dim fixed at 1024 by the module
    C = 42                        # opt['num_class']

    key = jax.random.PRNGKey(0)
    k_h, k_m, k_s, k_o, k_w, k_b = jax.random.split(key, 6)

    h = jax.random.normal(k_h, (B, S, D), dtype=jnp.float32)
    masks = jax.random.bernoulli(k_m, 0.7, (B, S)).astype(jnp.int32)       # 0 = pad
    subj_pos = jnp.where(jax.random.bernoulli(k_s, 0.25, (B, S)),
                         1000, jax.random.randint(k_s, (B, S), -5, 6)).astype(jnp.int32)
    obj_pos = jnp.where(jax.random.bernoulli(k_o, 0.25, (B, S)),
                        1000, jax.random.randint(k_o, (B, S), -5, 6)).astype(jnp.int32)
    # guarantee at least one non-filled position per row so 'avg' is well defined
    subj_pos = subj_pos.at[:, 0].set(1000)

    weight = (jax.random.uniform(k_w, (C, D), dtype=jnp.float32) - 0.5) * 0.05
    bias = (jax.random.uniform(k_b, (C,), dtype=jnp.float32) - 0.5) * 0.05

    for pooling in ('max', 'avg', 'sum'):
        logits = bert_classifier(h, masks, subj_pos, obj_pos, weight, bias, pooling)
        logits = jax.block_until_ready(logits)
        ref = _reference(h, masks, subj_pos, obj_pos, weight, bias, pooling)
        assert logits.shape == (B, C)
        assert jnp.allclose(logits, ref, atol=1e-3, rtol=1e-3), \
            f"mismatch vs reference for pooling={pooling}"

    print("KERNEL_OK")
</pallas_src>

<mosaic_0001>
module attributes {stable_mosaic.version = 11 : i64} {
  func.func @bert_classifier_kernel(%arg0: i32, %arg1: i32, %arg2: memref<2x8xf32, #tpu.memory_space<vmem>>, %arg3: memref<2x8x1024xf32, #tpu.memory_space<vmem>>, %arg4: memref<1024x128xf32, #tpu.memory_space<vmem>>, %arg5: memref<1x128xf32, #tpu.memory_space<vmem>>, %arg6: memref<2x128xf32, #tpu.memory_space<vmem>>, %arg7: memref<2x1024xf32, #tpu.memory_space<vmem>>, %arg8: memref<2x1xf32, #tpu.memory_space<vmem>>) attributes {dimension_semantics = [#tpu.dimension_semantics<parallel>, #tpu.dimension_semantics<arbitrary>], iteration_bounds = array<i64: 1, 1>, scalar_prefetch = 0 : i64, scratch_operands = 2 : i64, tpu.core_type = #tpu.core_type<tc>, window_params = [{transform_indices = @transform_0, window_bounds = array<i64: 2, 8>}, {transform_indices = @transform_1, window_bounds = array<i64: 2, 8, 1024>}, {pipeline_mode = #tpu.pipeline_mode<synchronous>, transform_indices = @transform_2, window_bounds = array<i64: 1024, 128>}, {pipeline_mode = #tpu.pipeline_mode<synchronous>, transform_indices = @transform_3, window_bounds = array<i64: 1, 128>}, {transform_indices = @transform_4, window_bounds = array<i64: 2, 128>}]} {
    %c0_i32 = arith.constant 0 : i32
    %0 = arith.cmpi eq, %arg1, %c0_i32 : i32
    %1 = arith.extui %0 : i1 to i32
    %c0_i32_0 = arith.constant 0 : i32
    %2 = arith.cmpi ne, %1, %c0_i32_0 : i32
    scf.if %2 {
      %cst_13 = arith.constant -9.99999995E+11 : f32
      %19 = vector.broadcast %cst_13 : f32 to vector<2x1024xf32>
      %c0_14 = arith.constant 0 : index
      %c0_15 = arith.constant 0 : index
      %20 = vector.load %arg7[%c0_14, %c0_15] : memref<2x1024xf32, #tpu.memory_space<vmem>>, vector<2x1024xf32>
      tpu.vector_store %arg7[%c0_14, %c0_15], %19 {strides = array<i32>} : memref<2x1024xf32, #tpu.memory_space<vmem>>, vector<2x1024xf32>,
      %cst_16 = arith.constant 0.000000e+00 : f32
      %21 = vector.broadcast %cst_16 : f32 to vector<2x1xf32>
      %c0_17 = arith.constant 0 : index
      %c0_18 = arith.constant 0 : index
      %22 = vector.load %arg8[%c0_17, %c0_18] : memref<2x1xf32, #tpu.memory_space<vmem>>, vector<2x1xf32>
      tpu.vector_store %arg8[%c0_17, %c0_18], %21 {strides = array<i32>} : memref<2x1xf32, #tpu.memory_space<vmem>>, vector<2x1xf32>,
    } else {
    }
    %c0 = arith.constant 0 : index
    %c0_1 = arith.constant 0 : index
    %3 = vector.load %arg2[%c0, %c0_1] : memref<2x8xf32, #tpu.memory_space<vmem>>, vector<2x8xf32>
    %c0_2 = arith.constant 0 : index
    %c0_3 = arith.constant 0 : index
    %c0_4 = arith.constant 0 : index
    %4 = vector.load %arg3[%c0_2, %c0_3, %c0_4] : memref<2x8x1024xf32, #tpu.memory_space<vmem>>, vector<2x8x1024xf32>
    %5 = vector.shape_cast %3 : vector<2x8xf32> to vector<2x8x1xf32>
    %cst = arith.constant 5.000000e-01 : f32
    %6 = vector.broadcast %cst : f32 to vector<2x8x1xf32>
    %7 = arith.cmpf ogt, %5, %6 : vector<2x8x1xf32>
    %cst_5 = arith.constant -9.99999995E+11 : f32
    %8 = vector.shape_cast %7 : vector<2x8x1xi1> to vector<2x8x1xi1>
    %9 = vector.broadcast %8 : vector<2x8x1xi1> to vector<2x8x1024xi1>
    %10 = vector.broadcast %cst_5 : f32 to vector<2x8x1024xf32>
    %11 = arith.select %9, %10, %4 : vector<2x8x1024xi1>, vector<2x8x1024xf32>
    %c0_6 = arith.constant 0 : index
    %c0_7 = arith.constant 0 : index
    %12 = vector.load %arg7[%c0_6, %c0_7] : memref<2x1024xf32, #tpu.memory_space<vmem>>, vector<2x1024xf32>
    %cst_8 = arith.constant dense<0xFF800000> : vector<2x1024xf32>
    %13 = vector.multi_reduction <maximumf>, %11, %cst_8 [1] : vector<2x8x1024xf32> to vector<2x1024xf32>
    %14 = arith.maximumf %12, %13 : vector<2x1024xf32>
    %c0_9 = arith.constant 0 : index
    %c0_10 = arith.constant 0 : index
    %15 = vector.load %arg7[%c0_9, %c0_10] : memref<2x1024xf32, #tpu.memory_space<vmem>>, vector<2x1024xf32>
    tpu.vector_store %arg7[%c0_9, %c0_10], %14 {strides = array<i32>} : memref<2x1024xf32, #tpu.memory_space<vmem>>, vector<2x1024xf32>,
    %c0_i32_11 = arith.constant 0 : i32
    %16 = arith.cmpi eq, %arg1, %c0_i32_11 : i32
    %17 = arith.extui %16 : i1 to i32
    %c0_i32_12 = arith.constant 0 : i32
    %18 = arith.cmpi ne, %17, %c0_i32_12 : i32
    scf.if %18 {
      %c0_13 = arith.constant 0 : index
      %c0_14 = arith.constant 0 : index
      %19 = vector.load %arg7[%c0_13, %c0_14] : memref<2x1024xf32, #tpu.memory_space<vmem>>, vector<2x1024xf32>
      %c0_15 = arith.constant 0 : index
      %c0_16 = arith.constant 0 : index
      %20 = vector.load %arg4[%c0_15, %c0_16] : memref<1024x128xf32, #tpu.memory_space<vmem>>, vector<1024x128xf32>
      %cst_17 = arith.constant dense<0.000000e+00> : vector<2x128xf32>
      %21 = tpu.matmul %19, %20, %cst_17 {dimension_numbers = #tpu.dot_dimension_numbers<[1], [0], [0], [1], [0, 0, 1, 1], [], []>} : vector<2x1024xf32>, vector<1024x128xf32>, vector<2x128xf32> -> vector<2x128xf32>
      %c0_18 = arith.constant 0 : index
      %c0_19 = arith.constant 0 : index
      %22 = vector.load %arg5[%c0_18, %c0_19] : memref<1x128xf32, #tpu.memory_space<vmem>>, vector<1x128xf32>
      %23 = vector.broadcast %22 : vector<1x128xf32> to vector<2x128xf32>
      %24 = arith.addf %21, %23 : vector<2x128xf32>
      %c0_20 = arith.constant 0 : index
      %c0_21 = arith.constant 0 : index
      %25 = vector.load %arg6[%c0_20, %c0_21] : memref<2x128xf32, #tpu.memory_space<vmem>>, vector<2x128xf32>
      tpu.vector_store %arg6[%c0_20, %c0_21], %24 {strides = array<i32>} : memref<2x128xf32, #tpu.memory_space<vmem>>, vector<2x128xf32>,
    } else {
    }
    return
  }
  func.func @transform_0(%arg0: i32, %arg1: i32) -> (i32, i32) {
    %c0_i32 = arith.constant 0 : i32
    return %arg0, %arg1 : i32, i32
  }
  func.func @transform_1(%arg0: i32, %arg1: i32) -> (i32, i32, i32) {
    %c0_i32 = arith.constant 0 : i32
    %c0_i32_0 = arith.constant 0 : i32
    return %arg0, %arg1, %c0_i32 : i32, i32, i32
  }
  func.func @transform_2(%arg0: i32, %arg1: i32) -> (i32, i32) {
    %c0_i32 = arith.constant 0 : i32
    %c0_i32_0 = arith.constant 0 : i32
    %c0_i32_1 = arith.constant 0 : i32
    return %c0_i32, %c0_i32_0 : i32, i32
  }
  func.func @transform_3(%arg0: i32, %arg1: i32) -> (i32, i32) {
    %c0_i32 = arith.constant 0 : i32
    %c0_i32_0 = arith.constant 0 : i32
    %c0_i32_1 = arith.constant 0 : i32
    return %c0_i32, %c0_i32_0 : i32, i32
  }
  func.func @transform_4(%arg0: i32, %arg1: i32) -> (i32, i32) {
    %c0_i32 = arith.constant 0 : i32
    %c0_i32_0 = arith.constant 0 : i32
    return %arg0, %c0_i32 : i32, i32
  }
}

</mosaic_0001>

<llo_original>
// kernel: tpu_custom_call.1
$region0: #{tpu_custom_call.1}
  #allocation0 [shape = 'u32[]', space=smem, size = 0x4, offset = 0x4, fixed_abs, tag = 'smem constant byte address 0x4 - core index']
  #allocation1 [shape = 'u32[144,128]{1,0:T(1,128)}', space=vmem, size = 0x12000, scoped, tag = 'internal scratch']
  #allocation2 [shape = 'f32[2,1024]{1,0:T(2,128)}', space=vmem, size = 0x2000, scoped, tag = 'scratch operand']
  #allocation3 [shape = 'f32[2,1]{1,0:T(2,128)}', space=vmem, size = 0x400, scoped, tag = 'scratch operand']
  %s0 = inlined_call_operand.hbm [shape: f32[2,8], index: 0, kind: input, shape index: {}]
  %s1 = inlined_call_operand.hbm [shape: f32[2,8,1024], index: 1, kind: input, shape index: {}]
  %s2 = inlined_call_operand.hbm [shape: f32[1024,128], index: 2, kind: input, shape index: {}]
  %s3 = inlined_call_operand.vmem [shape: f32[1,128], index: 3, kind: input, shape index: {}]
  %s4 = inlined_call_operand.hbm [shape: f32[2,128], index: 4, kind: output, shape index: {}]
  %s5 = sld [smem:[#allocation0]]
  $region46: #{tpu_custom_call.1} parent=0
    _
  %s7 = ssub.s32 1, %s5
  %s8 = scalar_select 0, %s7, %s5
  $region1: #{tpu_custom_call.1} parent=0
    #allocation4 [shape = 'u8[1024]{0}', space=vmem, size = 0x400, scoped, tag = 'input window, operand 0, single buffered']
    #allocation5 [shape = 's32[1]{0}', space=sflag, size = 0x4, scoped, tag = 'scoped memory for tpu_custom_call.1']
    #allocation6 [shape = 's32[1]{0}', space=sflag, size = 0x4, scoped, tag = 'scoped memory for tpu_custom_call.1']
    #allocation7 [shape = 'u8[65536]{0}', space=vmem, size = 0x10000, scoped, tag = 'input window, operand 1, single buffered']
    #allocation8 [shape = 's32[1]{0}', space=sflag, size = 0x4, scoped, tag = 'scoped memory for tpu_custom_call.1']
    #allocation9 [shape = 'u8[524288]{0}', space=vmem, size = 0x80000, scoped, tag = 'input window, operand 2, single buffered']
    #allocation10 [shape = 'u8[1024]{0}', space=vmem, size = 0x400, scoped, tag = 'output window, operand 0, single buffered']
    %9 = vsyncpa [#allocation5], 0
    %10 = vsyncpa [#allocation8], 0
    %11 = vsyncpa [#allocation6], 0
    // Predicated region
    $region2: #{tpu_custom_call.1} parent=1 // pred_check
      _
    $region3: #{tpu_custom_call.1} parent=1 // pred_check_branch
      %13 = sbr.rel (0) target = $region5
    $region4: #{tpu_custom_call.1} parent=1 // pred_region
      %s15 = ssub.s32 32, 32
      %16 = vsyncadd [#allocation5], %s15
      %s18 = sshll.u32 [#allocation4], 4
      %s19 = int_to_ptr.vmem [resolvable:$true] %s18
      %21 = dma.hbm_to_vmem [thread:$0]  %s0, 32, %s19, [#allocation5]
    $region5: #{tpu_custom_call.1} parent=1 // pred_fallthru
      _
    // Predicated region
    $region6: #{tpu_custom_call.1} parent=1 // pred_check
      _
    $region7: #{tpu_custom_call.1} parent=1 // pred_check_branch
      %23 = sbr.rel (0) target = $region9
    $region8: #{tpu_custom_call.1} parent=1 // pred_region
      %s25 = ssub.s32 2048, 2048
      %26 = vsyncadd [#allocation8], %s25
      %s27 = sshll.u32 [#allocation7], 4
      %s28 = int_to_ptr.vmem [resolvable:$true] %s27
      %33 = dma.hbm_to_vmem [thread:$0]  %s1, 2048, %s28, [#allocation8], 1024, 1024, 64
    $region9: #{tpu_custom_call.1} parent=1 // pred_fallthru
      _
    // Predicated region
    $region10: #{tpu_custom_call.1} parent=1 // pred_check
      _
    $region11: #{tpu_custom_call.1} parent=1 // pred_check_branch
      %35 = sbr.rel (0) target = $region13
    $region12: #{tpu_custom_call.1} parent=1 // pred_region
      %s37 = ssub.s32 16384, 16384
      %38 = vsyncadd [#allocation8], %s37
      %s39 = sshll.u32 [#allocation9], 4
      %s40 = int_to_ptr.vmem [resolvable:$true] %s39
      %45 = dma.hbm_to_vmem [thread:$0]  %s2, 16384, %s40, [#allocation8], 128, 128, 8
    $region13: #{tpu_custom_call.1} parent=1 // pred_fallthru
      _
    // Predicated region
    $region14: #{tpu_custom_call.1} parent=1 // pred_check
      _
    $region15: #{tpu_custom_call.1} parent=1 // pred_check_branch
      %47 = sbr.rel (0) target = $region17
    $region16: #{tpu_custom_call.1} parent=1 // pred_region
      _
    $region17: #{tpu_custom_call.1} parent=1 // pred_fallthru
      _
    // Predicated region
    $region18: #{tpu_custom_call.1} parent=1 // pred_check
      _
    $region19: #{tpu_custom_call.1} parent=1 // pred_check_branch
      %49 = sbr.rel (0) target = $region21
    $region20: #{tpu_custom_call.1} parent=1 // pred_region
      %50 = dma.done [#allocation5], 32
    $region21: #{tpu_custom_call.1} parent=1 // pred_fallthru
      _
    // Predicated region
    $region22: #{tpu_custom_call.1} parent=1 // pred_check
      _
    $region23: #{tpu_custom_call.1} parent=1 // pred_check_branch
      %52 = sbr.rel (0) target = $region25
    $region24: #{tpu_custom_call.1} parent=1 // pred_region
      %53 = dma.done [#allocation8], 2048
    $region25: #{tpu_custom_call.1} parent=1 // pred_fallthru
      _
    // Predicated region
    $region26: #{tpu_custom_call.1} parent=1 // pred_check
      _
    $region27: #{tpu_custom_call.1} parent=1 // pred_check_branch
      %55 = sbr.rel (0) target = $region29
    $region28: #{tpu_custom_call.1} parent=1 // pred_region
      %56 = dma.done [#allocation8], 16384
    $region29: #{tpu_custom_call.1} parent=1 // pred_fallthru
      _
    %p57 = scmp.eq.s32.totalorder 0, 0
    // Predicated region
    $region30: #{tpu_custom_call.1} parent=1 // pred_check
      %p58 = pneg %p57
    $region31: #{tpu_custom_call.1} parent=1 // pred_check_branch
      %60 = sbr.rel (%p58) target = $region33
    $region32: #{tpu_custom_call.1} parent=1 // pred_region
      %61 = vst [vmem:[#allocation2] sm:$0xff] -1e+12
      %62 = vst [vmem:[#allocation2 + $0x8] sm:$0xff] -1e+12
      %vm63 = vcmask 1024
      %64 = vst.msk [vmem:[#allocation3] sm:$0x3] %vm63, 0.0
    $region33: #{tpu_custom_call.1} parent=1 // pred_fallthru
      _
    %v65 = vld [vmem:[#allocation4] sm:$0x3]
    %v66 = vld [vmem:[#allocation7] sm:$0xff]
    %v67 = vld [vmem:[#allocation7 + $0x8] sm:$0xff]
    %v68 = vld [vmem:[#allocation7 + $0x10] sm:$0xff]
    %v69 = vld [vmem:[#allocation7 + $0x18] sm:$0xff]
    %v70 = vld [vmem:[#allocation7 + $0x20] sm:$0xff]
    %v71 = vld [vmem:[#allocation7 + $0x28] sm:$0xff]
    %v72 = vld [vmem:[#allocation7 + $0x30] sm:$0xff]
    %v73 = vld [vmem:[#allocation7 + $0x38] sm:$0xff]
    %v74 = vld [vmem:[#allocation7 + $0x40] sm:$0xff]
    %v75 = vld [vmem:[#allocation7 + $0x48] sm:$0xff]
    %v76 = vld [vmem:[#allocation7 + $0x50] sm:$0xff]
    %v77 = vld [vmem:[#allocation7 + $0x58] sm:$0xff]
    %v78 = vld [vmem:[#allocation7 + $0x60] sm:$0xff]
    %v79 = vld [vmem:[#allocation7 + $0x68] sm:$0xff]
    %v80 = vld [vmem:[#allocation7 + $0x70] sm:$0xff]
    %v81 = vld [vmem:[#allocation7 + $0x78] sm:$0xff]
    %v82 = vlaneseq
    %v83 = vshrl.u32 %v82, 7
    %v84 = vsub.s32 0, %v83
    %v85 = vrot.slane %v65, %v84
    %87 = vbcast.lane.b32.xlu0 %v85, 256
    %v88 = vpop.permute.xlu0 %87
    %v89 = vlaneseq
    %v90 = vshrl.u32 %v89, 7
    %v91 = vsub.s32 1, %v90
    %v92 = vrot.slane %v65, %v91
    %94 = vbcast.lane.b32.xlu0 %v92, 256
    %v95 = vpop.permute.xlu0 %94
    %vm96 = vcmp.gt.f32.partialorder %v88, 0.5
    %vm97 = vcmp.gt.f32.partialorder %v95, 0.5
    %v98 = vsel %vm96, 1, 0
    %v99 = vsel %vm97, 1, 0
    %vm100 = vcmp.eq.s32.totalorder %v98, 1
    %vm101 = vcmp.eq.s32.totalorder %v99, 1
    %v102 = vsel %vm100, -1e+12, %v66
    %v103 = vsel %vm100, -1e+12, %v67
    %v104 = vsel %vm100, -1e+12, %v68
    %v105 = vsel %vm100, -1e+12, %v69
    %v106 = vsel %vm100, -1e+12, %v70
    %v107 = vsel %vm100, -1e+12, %v71
    %v108 = vsel %vm100, -1e+12, %v72
    %v109 = vsel %vm100, -1e+12, %v73
    %v110 = vsel %vm101, -1e+12, %v74
    %v111 = vsel %vm101, -1e+12, %v75
    %v112 = vsel %vm101, -1e+12, %v76
    %v113 = vsel %vm101, -1e+12, %v77
    %v114 = vsel %vm101, -1e+12, %v78
    %v115 = vsel %vm101, -1e+12, %v79
    %v116 = vsel %vm101, -1e+12, %v80
    %v117 = vsel %vm101, -1e+12, %v81
    %v118 = vld [vmem:[#allocation2] sm:$0xff]
    %v119 = vld [vmem:[#allocation2 + $0x8] sm:$0xff]
    %v120 = vrot.slane %v102, 4
    %v121 = vmax.f32 %v102, %v120
    %v122 = vrot.slane %v121, 2
    %v123 = vmax.f32 %v121, %v122
    %v124 = vrot.slane %v123, 1
    %v125 = vmax.f32 %v123, %v124
    %v126 = vrot.slane %v103, 4
    %v127 = vmax.f32 %v103, %v126
    %v128 = vrot.slane %v127, 2
    %v129 = vmax.f32 %v127, %v128
    %v130 = vrot.slane %v129, 1
    %v131 = vmax.f32 %v129, %v130
    %v132 = vrot.slane %v104, 4
    %v133 = vmax.f32 %v104, %v132
    %v134 = vrot.slane %v133, 2
    %v135 = vmax.f32 %v133, %v134
    %v136 = vrot.slane %v135, 1
    %v137 = vmax.f32 %v135, %v136
    %v138 = vrot.slane %v105, 4
    %v139 = vmax.f32 %v105, %v138
    %v140 = vrot.slane %v139, 2
    %v141 = vmax.f32 %v139, %v140
    %v142 = vrot.slane %v141, 1
    %v143 = vmax.f32 %v141, %v142
    %v144 = vrot.slane %v106, 4
    %v145 = vmax.f32 %v106, %v144
    %v146 = vrot.slane %v145, 2
    %v147 = vmax.f32 %v145, %v146
    %v148 = vrot.slane %v147, 1
    %v149 = vmax.f32 %v147, %v148
    %v150 = vrot.slane %v107, 4
    %v151 = vmax.f32 %v107, %v150
    %v152 = vrot.slane %v151, 2
    %v153 = vmax.f32 %v151, %v152
    %v154 = vrot.slane %v153, 1
    %v155 = vmax.f32 %v153, %v154
    %v156 = vrot.slane %v108, 4
    %v157 = vmax.f32 %v108, %v156
    %v158 = vrot.slane %v157, 2
    %v159 = vmax.f32 %v157, %v158
    %v160 = vrot.slane %v159, 1
    %v161 = vmax.f32 %v159, %v160
    %v162 = vrot.slane %v109, 4
    %v163 = vmax.f32 %v109, %v162
    %v164 = vrot.slane %v163, 2
    %v165 = vmax.f32 %v163, %v164
    %v166 = vrot.slane %v165, 1
    %v167 = vmax.f32 %v165, %v166
    %v168 = vrot.slane %v110, 4
    %v169 = vmax.f32 %v110, %v168
    %v170 = vrot.slane %v169, 2
    %v171 = vmax.f32 %v169, %v170
    %v172 = vrot.slane %v171, 1
    %v173 = vmax.f32 %v171, %v172
    %v174 = vrot.slane %v111, 4
    %v175 = vmax.f32 %v111, %v174
    %v176 = vrot.slane %v175, 2
    %v177 = vmax.f32 %v175, %v176
    %v178 = vrot.slane %v177, 1
    %v179 = vmax.f32 %v177, %v178
    %v180 = vrot.slane %v112, 4
    %v181 = vmax.f32 %v112, %v180
    %v182 = vrot.slane %v181, 2
    %v183 = vmax.f32 %v181, %v182
    %v184 = vrot.slane %v183, 1
    %v185 = vmax.f32 %v183, %v184
    %v186 = vrot.slane %v113, 4
    %v187 = vmax.f32 %v113, %v186
    %v188 = vrot.slane %v187, 2
    %v189 = vmax.f32 %v187, %v188
    %v190 = vrot.slane %v189, 1
    %v191 = vmax.f32 %v189, %v190
    %v192 = vrot.slane %v114, 4
    %v193 = vmax.f32 %v114, %v192
    %v194 = vrot.slane %v193, 2
    %v195 = vmax.f32 %v193, %v194
    %v196 = vrot.slane %v195, 1
    %v197 = vmax.f32 %v195, %v196
    %v198 = vrot.slane %v115, 4
    %v199 = vmax.f32 %v115, %v198
    %v200 = vrot.slane %v199, 2
    %v201 = vmax.f32 %v199, %v200
    %v202 = vrot.slane %v201, 1
    %v203 = vmax.f32 %v201, %v202
    %v204 = vrot.slane %v116, 4
    %v205 = vmax.f32 %v116, %v204
    %v206 = vrot.slane %v205, 2
    %v207 = vmax.f32 %v205, %v206
    %v208 = vrot.slane %v207, 1
    %v209 = vmax.f32 %v207, %v208
    %v210 = vrot.slane %v117, 4
    %v211 = vmax.f32 %v117, %v210
    %v212 = vrot.slane %v211, 2
    %v213 = vmax.f32 %v211, %v212
    %v214 = vrot.slane %v213, 1
    %v215 = vmax.f32 %v213, %v214
    %v232 = vcombine.low %v125, %v131
    %v233 = vcombine.low %v137, %v143
    %v235 = vunpack.c.l.s4 1983009808
    %v236 = vunpack.c.0.s8 %v235
    %v237 = vlaneseq
    %v238 = vshrl.u32 %v237, 7
    %v239 = vsub.s32 %v236, %v238
    %v240 = vrot.slane %v232, %v239
    %v242 = vunpack.c.l.s4 1983009808
    %v243 = vunpack.c.0.s8 %v242
    %v244 = vlaneseq
    %v245 = vshrl.u32 %v244, 7
    %v246 = vsub.s32 %v243, %v245
    %v247 = vrot.slane %v233, %v246
    %v248 = vcombine.low %v240, %v247
    %v249 = vcombine.low %v149, %v155
    %v250 = vcombine.low %v161, %v167
    %v252 = vunpack.c.l.s4 1983009808
    %v253 = vunpack.c.0.s8 %v252
    %v254 = vlaneseq
    %v255 = vshrl.u32 %v254, 7
    %v256 = vsub.s32 %v253, %v255
    %v257 = vrot.slane %v249, %v256
    %v259 = vunpack.c.l.s4 1983009808
    %v260 = vunpack.c.0.s8 %v259
    %v261 = vlaneseq
    %v262 = vshrl.u32 %v261, 7
    %v263 = vsub.s32 %v260, %v262
    %v264 = vrot.slane %v250, %v263
    %v265 = vcombine.low %v257, %v264
    %v266 = vcombine.low %v173, %v179
    %v267 = vcombine.low %v185, %v191
    %v269 = vunpack.c.l.s4 1983009808
    %v270 = vunpack.c.0.s8 %v269
    %v271 = vlaneseq
    %v272 = vshrl.u32 %v271, 7
    %v273 = vsub.s32 %v270, %v272
    %v274 = vrot.slane %v266, %v273
    %v276 = vunpack.c.l.s4 1983009808
    %v277 = vunpack.c.0.s8 %v276
    %v278 = vlaneseq
    %v279 = vshrl.u32 %v278, 7
    %v280 = vsub.s32 %v277, %v279
    %v281 = vrot.slane %v267, %v280
    %v282 = vcombine.low %v274, %v281
    %v283 = vcombine.low %v197, %v203
    %v284 = vcombine.low %v209, %v215
    %v286 = vunpack.c.l.s4 1983009808
    %v287 = vunpack.c.0.s8 %v286
    %v288 = vlaneseq
    %v289 = vshrl.u32 %v288, 7
    %v290 = vsub.s32 %v287, %v289
    %v291 = vrot.slane %v283, %v290
    %v293 = vunpack.c.l.s4 1983009808
    %v294 = vunpack.c.0.s8 %v293
    %v295 = vlaneseq
    %v296 = vshrl.u32 %v295, 7
    %v297 = vsub.s32 %v294, %v296
    %v298 = vrot.slane %v284, %v297
    %v299 = vcombine.low %v291, %v298
    %vm300 = vcmask 1044484
    %v301 = vsel %vm300, %v248, %v248
    %vm302 = vcmask 1046534
    %v303 = vsel %vm302, %v248, %v301
    %v304 = vrot.slane %v282, 7
    %vm305 = vcmask 1041409
    %v306 = vsel %vm305, %v304, %v303
    %vm307 = vcmask 1043459
    %v308 = vsel %vm307, %v304, %v306
    %vm309 = vcmask 1045509
    %v310 = vsel %vm309, %v304, %v308
    %vm311 = vcmask 1047559
    %v312 = vsel %vm311, %v304, %v310
    %v313 = vsel %vm300, %v265, %v265
    %v314 = vsel %vm302, %v265, %v313
    %v315 = vrot.slane %v299, 7
    %v316 = vsel %vm305, %v315, %v314
    %v317 = vsel %vm307, %v315, %v316
    %v318 = vsel %vm309, %v315, %v317
    %v319 = vsel %vm311, %v315, %v318
    %v322 = vmax.f32 %v118, %v312
    %v323 = vmax.f32 %v119, %v319
    %324 = vst [vmem:[#allocation2] sm:$0xff] %v322
    %325 = vst [vmem:[#allocation2 + $0x8] sm:$0xff] %v323
    // Predicated region
    $region34: #{tpu_custom_call.1} parent=1 // pred_check
      %p326 = pneg %p57
    $region35: #{tpu_custom_call.1} parent=1 // pred_check_branch
      %328 = sbr.rel (%p326) target = $region37
    $region36: #{tpu_custom_call.1} parent=1 // pred_region
      %v329 = vld [vmem:[#allocation2] sm:$0xff]
      %v330 = vld [vmem:[#allocation2 + $0x8] sm:$0xff]
      %v331 = vld [vmem:[#allocation9] sm:$0xff]
      %v332 = vld [vmem:[#allocation9 + $0x8] sm:$0xff]
      %v333 = vld [vmem:[#allocation9 + $0x10] sm:$0xff]
      %v334 = vld [vmem:[#allocation9 + $0x18] sm:$0xff]
      %v335 = vld [vmem:[#allocation9 + $0x20] sm:$0xff]
      %v336 = vld [vmem:[#allocation9 + $0x28] sm:$0xff]
      %v337 = vld [vmem:[#allocation9 + $0x30] sm:$0xff]
      %v338 = vld [vmem:[#allocation9 + $0x38] sm:$0xff]
      %v339 = vld [vmem:[#allocation9 + $0x40] sm:$0xff]
      %v340 = vld [vmem:[#allocation9 + $0x48] sm:$0xff]
      %v341 = vld [vmem:[#allocation9 + $0x50] sm:$0xff]
      %v342 = vld [vmem:[#allocation9 + $0x58] sm:$0xff]
      %v343 = vld [vmem:[#allocation9 + $0x60] sm:$0xff]
      %v344 = vld [vmem:[#allocation9 + $0x68] sm:$0xff]
      %v345 = vld [vmem:[#allocation9 + $0x70] sm:$0xff]
      %v346 = vld [vmem:[#allocation9 + $0x78] sm:$0xff]
      %v347 = vld [vmem:[#allocation9 + $0x80] sm:$0xff]
      %v348 = vld [vmem:[#allocation9 + $0x88] sm:$0xff]
      %v349 = vld [vmem:[#allocation9 + $0x90] sm:$0xff]
      %v350 = vld [vmem:[#allocation9 + $0x98] sm:$0xff]
      %v351 = vld [vmem:[#allocation9 + $0xa0] sm:$0xff]
      %v352 = vld [vmem:[#allocation9 + $0xa8] sm:$0xff]
      %v353 = vld [vmem:[#allocation9 + $0xb0] sm:$0xff]
      %v354 = vld [vmem:[#allocation9 + $0xb8] sm:$0xff]
      %v355 = vld [vmem:[#allocation9 + $0xc0] sm:$0xff]
      %v356 = vld [vmem:[#allocation9 + $0xc8] sm:$0xff]
      %v357 = vld [vmem:[#allocation9 + $0xd0] sm:$0xff]
      %v358 = vld [vmem:[#allocation9 + $0xd8] sm:$0xff]
      %v359 = vld [vmem:[#allocation9 + $0xe0] sm:$0xff]
      %v360 = vld [vmem:[#allocation9 + $0xe8] sm:$0xff]
      %v361 = vld [vmem:[#allocation9 + $0xf0] sm:$0xff]
      %v362 = vld [vmem:[#allocation9 + $0xf8] sm:$0xff]
      %v363 = vld [vmem:[#allocation9 + $0x100] sm:$0xff]
      %v364 = vld [vmem:[#allocation9 + $0x108] sm:$0xff]
      %v365 = vld [vmem:[#allocation9 + $0x110] sm:$0xff]
      %v366 = vld [vmem:[#allocation9 + $0x118] sm:$0xff]
      %v367 = vld [vmem:[#allocation9 + $0x120] sm:$0xff]
      %v368 = vld [vmem:[#allocation9 + $0x128] sm:$0xff]
      %v369 = vld [vmem:[#allocation9 + $0x130] sm:$0xff]
      %v370 = vld [vmem:[#allocation9 + $0x138] sm:$0xff]
      %v371 = vld [vmem:[#allocation9 + $0x140] sm:$0xff]
      %v372 = vld [vmem:[#allocation9 + $0x148] sm:$0xff]
      %v373 = vld [vmem:[#allocation9 + $0x150] sm:$0xff]
      %v374 = vld [vmem:[#allocation9 + $0x158] sm:$0xff]
      %v375 = vld [vmem:[#allocation9 + $0x160] sm:$0xff]
      %v376 = vld [vmem:[#allocation9 + $0x168] sm:$0xff]
      %v377 = vld [vmem:[#allocation9 + $0x170] sm:$0xff]
      %v378 = vld [vmem:[#allocation9 + $0x178] sm:$0xff]
      %v379 = vld [vmem:[#allocation9 + $0x180] sm:$0xff]
      %v380 = vld [vmem:[#allocation9 + $0x188] sm:$0xff]
      %v381 = vld [vmem:[#allocation9 + $0x190] sm:$0xff]
      %v382 = vld [vmem:[#allocation9 + $0x198] sm:$0xff]
      %v383 = vld [vmem:[#allocation9 + $0x1a0] sm:$0xff]
      %v384 = vld [vmem:[#allocation9 + $0x1a8] sm:$0xff]
      %v385 = vld [vmem:[#allocation9 + $0x1b0] sm:$0xff]
      %v386 = vld [vmem:[#allocation9 + $0x1b8] sm:$0xff]
      %v387 = vld [vmem:[#allocation9 + $0x1c0] sm:$0xff]
      %v388 = vld [vmem:[#allocation9 + $0x1c8] sm:$0xff]
      %v389 = vld [vmem:[#allocation9 + $0x1d0] sm:$0xff]
      %v390 = vld [vmem:[#allocation9 + $0x1d8] sm:$0xff]
      %v391 = vld [vmem:[#allocation9 + $0x1e0] sm:$0xff]
      %v392 = vld [vmem:[#allocation9 + $0x1e8] sm:$0xff]
      %v393 = vld [vmem:[#allocation9 + $0x1f0] sm:$0xff]
      %v394 = vld [vmem:[#allocation9 + $0x1f8] sm:$0xff]
      %v395 = vld [vmem:[#allocation9 + $0x200] sm:$0xff]
      %v396 = vld [vmem:[#allocation9 + $0x208] sm:$0xff]
      %v397 = vld [vmem:[#allocation9 + $0x210] sm:$0xff]
      %v398 = vld [vmem:[#allocation9 + $0x218] sm:$0xff]
      %v399 = vld [vmem:[#allocation9 + $0x220] sm:$0xff]
      %v400 = vld [vmem:[#allocation9 + $0x228] sm:$0xff]
      %v401 = vld [vmem:[#allocation9 + $0x230] sm:$0xff]
      %v402 = vld [vmem:[#allocation9 + $0x238] sm:$0xff]
      %v403 = vld [vmem:[#allocation9 + $0x240] sm:$0xff]
      %v404 = vld [vmem:[#allocation9 + $0x248] sm:$0xff]
      %v405 = vld [vmem:[#allocation9 + $0x250] sm:$0xff]
      %v406 = vld [vmem:[#allocation9 + $0x258] sm:$0xff]
      %v407 = vld [vmem:[#allocation9 + $0x260] sm:$0xff]
      %v408 = vld [vmem:[#allocation9 + $0x268] sm:$0xff]
      %v409 = vld [vmem:[#allocation9 + $0x270] sm:$0xff]
      %v410 = vld [vmem:[#allocation9 + $0x278] sm:$0xff]
      %v411 = vld [vmem:[#allocation9 + $0x280] sm:$0xff]
      %v412 = vld [vmem:[#allocation9 + $0x288] sm:$0xff]
      %v413 = vld [vmem:[#allocation9 + $0x290] sm:$0xff]
      %v414 = vld [vmem:[#allocation9 + $0x298] sm:$0xff]
      %v415 = vld [vmem:[#allocation9 + $0x2a0] sm:$0xff]
      %v416 = vld [vmem:[#allocation9 + $0x2a8] sm:$0xff]
      %v417 = vld [vmem:[#allocation9 + $0x2b0] sm:$0xff]
      %v418 = vld [vmem:[#allocation9 + $0x2b8] sm:$0xff]
      %v419 = vld [vmem:[#allocation9 + $0x2c0] sm:$0xff]
      %v420 = vld [vmem:[#allocation9 + $0x2c8] sm:$0xff]
      %v421 = vld [vmem:[#allocation9 + $0x2d0] sm:$0xff]
      %v422 = vld [vmem:[#allocation9 + $0x2d8] sm:$0xff]
      %v423 = vld [vmem:[#allocation9 + $0x2e0] sm:$0xff]
      %v424 = vld [vmem:[#allocation9 + $0x2e8] sm:$0xff]
      %v425 = vld [vmem:[#allocation9 + $0x2f0] sm:$0xff]
      %v426 = vld [vmem:[#allocation9 + $0x2f8] sm:$0xff]
      %v427 = vld [vmem:[#allocation9 + $0x300] sm:$0xff]
      %v428 = vld [vmem:[#allocation9 + $0x308] sm:$0xff]
      %v429 = vld [vmem:[#allocation9 + $0x310] sm:$0xff]
      %v430 = vld [vmem:[#allocation9 + $0x318] sm:$0xff]
      %v431 = vld [vmem:[#allocation9 + $0x320] sm:$0xff]
      %v432 = vld [vmem:[#allocation9 + $0x328] sm:$0xff]
      %v433 = vld [vmem:[#allocation9 + $0x330] sm:$0xff]
      %v434 = vld [vmem:[#allocation9 + $0x338] sm:$0xff]
      %v435 = vld [vmem:[#allocation9 + $0x340] sm:$0xff]
      %v436 = vld [vmem:[#allocation9 + $0x348] sm:$0xff]
      %v437 = vld [vmem:[#allocation9 + $0x350] sm:$0xff]
      %v438 = vld [vmem:[#allocation9 + $0x358] sm:$0xff]
      %v439 = vld [vmem:[#allocation9 + $0x360] sm:$0xff]
      %v440 = vld [vmem:[#allocation9 + $0x368] sm:$0xff]
      %v441 = vld [vmem:[#allocation9 + $0x370] sm:$0xff]
      %v442 = vld [vmem:[#allocation9 + $0x378] sm:$0xff]
      %v443 = vld [vmem:[#allocation9 + $0x380] sm:$0xff]
      %v444 = vld [vmem:[#allocation9 + $0x388] sm:$0xff]
      %v445 = vld [vmem:[#allocation9 + $0x390] sm:$0xff]
      %v446 = vld [vmem:[#allocation9 + $0x398] sm:$0xff]
      %v447 = vld [vmem:[#allocation9 + $0x3a0] sm:$0xff]
      %v448 = vld [vmem:[#allocation9 + $0x3a8] sm:$0xff]
      %v449 = vld [vmem:[#allocation9 + $0x3b0] sm:$0xff]
      %v450 = vld [vmem:[#allocation9 + $0x3b8] sm:$0xff]
      %v451 = vld [vmem:[#allocation9 + $0x3c0] sm:$0xff]
      %v452 = vld [vmem:[#allocation9 + $0x3c8] sm:$0xff]
      %v453 = vld [vmem:[#allocation9 + $0x3d0] sm:$0xff]
      %v454 = vld [vmem:[#allocation9 + $0x3d8] sm:$0xff]
      %v455 = vld [vmem:[#allocation9 + $0x3e0] sm:$0xff]
      %v456 = vld [vmem:[#allocation9 + $0x3e8] sm:$0xff]
      %v457 = vld [vmem:[#allocation9 + $0x3f0] sm:$0xff]
      %v458 = vld [vmem:[#allocation9 + $0x3f8] sm:$0xff]
      %v459 = vld [vmem:[%s3] sm:$0x1]
      %v461 = vlaneseq
      %v462 = vshrl.u32 %v461, 7
      %v463 = vsub.s32 0, %v462
      %v464 = vrot.slane %v459, %v463
      %v468 = vcombine.high %v329, %v329
      %v470 = vunpack.c.l.s4 1983009808
      %v471 = vunpack.c.0.s8 %v470
      %v472 = vlaneseq
      %v473 = vshrl.u32 %v472, 7
      %v474 = vsub.s32 %v471, %v473
      %v475 = vrot.slane %v329, %v474
      %v477 = vunpack.c.l.s4 1983009808
      %v478 = vunpack.c.0.s8 %v477
      %v479 = vlaneseq
      %v480 = vshrl.u32 %v479, 7
      %v481 = vsub.s32 %v478, %v480
      %v482 = vrot.slane %v468, %v481
      %v483 = vcombine.high %v475, %v475
      %v484 = vcombine.high %v482, %v482
      %v485 = vcombine.high %v330, %v330
      %v487 = vunpack.c.l.s4 1983009808
      %v488 = vunpack.c.0.s8 %v487
      %v489 = vlaneseq
      %v490 = vshrl.u32 %v489, 7
      %v491 = vsub.s32 %v488, %v490
      %v492 = vrot.slane %v330, %v491
      %v494 = vunpack.c.l.s4 1983009808
      %v495 = vunpack.c.0.s8 %v494
      %v496 = vlaneseq
      %v497 = vshrl.u32 %v496, 7
      %v498 = vsub.s32 %v495, %v497
      %v499 = vrot.slane %v485, %v498
      %v500 = vcombine.high %v492, %v492
      %v501 = vcombine.high %v499, %v499
      %510 = vmatprep.subr.mxu0 0.0
      %511 = vmatpush1.msra.mxu0 %v331
      %512 = vmatprep.subr.mxu0 0.0
      %513 = vmatpush1.msra.mxu0 %v332
      %514 = vmatprep.subr.mxu0 0.0
      %515 = vmatpush1.msra.mxu0 %v333
      %516 = vmatprep.subr.mxu0 0.0
      %517 = vmatpush1.msra.mxu0 %v334
      %518 = vmatprep.subr.mxu0 0.0
      %519 = vmatpush1.msra.mxu0 %v335
      %520 = vmatprep.subr.mxu0 0.0
      %521 = vmatpush1.msra.mxu0 %v336
      %522 = vmatprep.subr.mxu0 0.0
      %523 = vmatpush1.msra.mxu0 %v337
      %524 = vmatprep.subr.mxu0 0.0
      %525 = vmatpush1.msra.mxu0 %v338
      %526 = vmatprep.subr.mxu0 0.0
      %527 = vmatpush1.msra.mxu0 %v339
      %528 = vmatprep.subr.mxu0 0.0
      %529 = vmatpush1.msra.mxu0 %v340
      %530 = vmatprep.subr.mxu0 0.0
      %531 = vmatpush1.msra.mxu0 %v341
      %532 = vmatprep.subr.mxu0 0.0
      %533 = vmatpush1.msra.mxu0 %v342
      %534 = vmatprep.subr.mxu0 0.0
      %535 = vmatpush1.msra.mxu0 %v343
      %536 = vmatprep.subr.mxu0 0.0
      %537 = vmatpush1.msra.mxu0 %v344
      %538 = vmatprep.subr.mxu0 0.0
      %539 = vmatpush1.msra.mxu0 %v345
      %540 = vmatprep.subr.mxu0 0.0
      %541 = vmatpush1.msra.mxu0 %v346
      %542 = vmatprep.subr.mxu0 0.0
      %543 = vmatpush1.msra.mxu0 %v347
      %544 = vmatprep.subr.mxu0 0.0
      %545 = vmatpush1.msra.mxu0 %v348
      %546 = vmatprep.subr.mxu0 0.0
      %547 = vmatpush1.msra.mxu0 %v349
      %548 = vmatprep.subr.mxu0 0.0
      %549 = vmatpush1.msra.mxu0 %v350
      %550 = vmatprep.subr.mxu0 0.0
      %551 = vmatpush1.msra.mxu0 %v351
      %552 = vmatprep.subr.mxu0 0.0
      %553 = vmatpush1.msra.mxu0 %v352
      %554 = vmatprep.subr.mxu0 0.0
      %555 = vmatpush1.msra.mxu0 %v353
      %556 = vmatprep.subr.mxu0 0.0
      %557 = vmatpush1.msra.mxu0 %v354
      %558 = vmatprep.subr.mxu0 0.0
      %559 = vmatpush1.msra.mxu0 %v355
      %560 = vmatprep.subr.mxu0 0.0
      %561 = vmatpush1.msra.mxu0 %v356
      %562 = vmatprep.subr.mxu0 0.0
      %563 = vmatpush1.msra.mxu0 %v357
      %564 = vmatprep.subr.mxu0 0.0
      %565 = vmatpush1.msra.mxu0 %v358
      %566 = vmatprep.subr.mxu0 0.0
      %567 = vmatpush1.msra.mxu0 %v359
      %568 = vmatprep.subr.mxu0 0.0
      %569 = vmatpush1.msra.mxu0 %v360
      %570 = vmatprep.subr.mxu0 0.0
      %571 = vmatpush1.msra.mxu0 %v361
      %572 = vmatprep.subr.mxu0 0.0
      %573 = vmatpush1.msra.mxu0 %v362
      %574 = vmatprep.mubr.f32.mxu0 %v483
      %575 = vmatmul.mubr.f32.gmra.mrb[0].mxu0 %v475
      %v576 = vpop.f32.mrb[0].mxu0
      %v577 = vadd.f32 %v464, %v576
      %v578 = vpop.f32.mrb[0].mxu0
      %579 = vdwg.mxu0
      %580 = vmatprep.subr.mxu0 0.0
      %581 = vmatpush1.msra.mxu0 %v363
      %582 = vmatprep.subr.mxu0 0.0
      %583 = vmatpush1.msra.mxu0 %v364
      %584 = vmatprep.subr.mxu0 0.0
      %585 = vmatpush1.msra.mxu0 %v365
      %586 = vmatprep.subr.mxu0 0.0
      %587 = vmatpush1.msra.mxu0 %v366
      %588 = vmatprep.subr.mxu0 0.0
      %589 = vmatpush1.msra.mxu0 %v367
      %590 = vmatprep.subr.mxu0 0.0
      %591 = vmatpush1.msra.mxu0 %v368
      %592 = vmatprep.subr.mxu0 0.0
      %593 = vmatpush1.msra.mxu0 %v369
      %594 = vmatprep.subr.mxu0 0.0
      %595 = vmatpush1.msra.mxu0 %v370
      %596 = vmatprep.subr.mxu0 0.0
      %597 = vmatpush1.msra.mxu0 %v371
      %598 = vmatprep.subr.mxu0 0.0
      %599 = vmatpush1.msra.mxu0 %v372
      %600 = vmatprep.subr.mxu0 0.0
      %601 = vmatpush1.msra.mxu0 %v373
      %602 = vmatprep.subr.mxu0 0.0
      %603 = vmatpush1.msra.mxu0 %v374
      %604 = vmatprep.subr.mxu0 0.0
      %605 = vmatpush1.msra.mxu0 %v375
      %606 = vmatprep.subr.mxu0 0.0
      %607 = vmatpush1.msra.mxu0 %v376
      %608 = vmatprep.subr.mxu0 0.0
      %609 = vmatpush1.msra.mxu0 %v377
      %610 = vmatprep.subr.mxu0 0.0
      %611 = vmatpush1.msra.mxu0 %v378
      %612 = vmatprep.subr.mxu0 0.0
      %613 = vmatpush1.msra.mxu0 %v379
      %614 = vmatprep.subr.mxu0 0.0
      %615 = vmatpush1.msra.mxu0 %v380
      %616 = vmatprep.subr.mxu0 0.0
      %617 = vmatpush1.msra.mxu0 %v381
      %618 = vmatprep.subr.mxu0 0.0
      %619 = vmatpush1.msra.mxu0 %v382
      %620 = vmatprep.subr.mxu0 0.0
      %621 = vmatpush1.msra.mxu0 %v383
      %622 = vmatprep.subr.mxu0 0.0
      %623 = vmatpush1.msra.mxu0 %v384
      %624 = vmatprep.subr.mxu0 0.0
      %625 = vmatpush1.msra.mxu0 %v385
      %626 = vmatprep.subr.mxu0 0.0
      %627 = vmatpush1.msra.mxu0 %v386
      %628 = vmatprep.subr.mxu0 0.0
      %629 = vmatpush1.msra.mxu0 %v387
      %630 = vmatprep.subr.mxu0 0.0
      %631 = vmatpush1.msra.mxu0 %v388
      %632 = vmatprep.subr.mxu0 0.0
      %633 = vmatpush1.msra.mxu0 %v389
      %634 = vmatprep.subr.mxu0 0.0
      %635 = vmatpush1.msra.mxu0 %v390
      %636 = vmatprep.subr.mxu0 0.0
      %637 = vmatpush1.msra.mxu0 %v391
      %638 = vmatprep.subr.mxu0 0.0
      %639 = vmatpush1.msra.mxu0 %v392
      %640 = vmatprep.subr.mxu0 0.0
      %641 = vmatpush1.msra.mxu0 %v393
      %642 = vmatprep.subr.mxu0 0.0
      %643 = vmatpush1.msra.mxu0 %v394
      %644 = vmatprep.mubr.f32.mxu0 %v484
      %645 = vmatmul.mubr.f32.gmra.mrb[0].mxu0 %v482
      %v646 = vpop.f32.mrb[0].mxu0
      %v647 = vadd.f32 %v577, %v646
      %v648 = vpop.f32.mrb[0].mxu0
      %649 = vdwg.mxu0
      %650 = vmatprep.subr.mxu0 0.0
      %651 = vmatpush1.msra.mxu0 %v395
      %652 = vmatprep.subr.mxu0 0.0
      %653 = vmatpush1.msra.mxu0 %v396
      %654 = vmatprep.subr.mxu0 0.0
      %655 = vmatpush1.msra.mxu0 %v397
      %656 = vmatprep.subr.mxu0 0.0
      %657 = vmatpush1.msra.mxu0 %v398
      %658 = vmatprep.subr.mxu0 0.0
      %659 = vmatpush1.msra.mxu0 %v399
      %660 = vmatprep.subr.mxu0 0.0
      %661 = vmatpush1.msra.mxu0 %v400
      %662 = vmatprep.subr.mxu0 0.0
      %663 = vmatpush1.msra.mxu0 %v401
      %664 = vmatprep.subr.mxu0 0.0
      %665 = vmatpush1.msra.mxu0 %v402
      %666 = vmatprep.subr.mxu0 0.0
      %667 = vmatpush1.msra.mxu0 %v403
      %668 = vmatprep.subr.mxu0 0.0
      %669 = vmatpush1.msra.mxu0 %v404
      %670 = vmatprep.subr.mxu0 0.0
      %671 = vmatpush1.msra.mxu0 %v405
      %672 = vmatprep.subr.mxu0 0.0
      %673 = vmatpush1.msra.mxu0 %v406
      %674 = vmatprep.subr.mxu0 0.0
      %675 = vmatpush1.msra.mxu0 %v407
      %676 = vmatprep.subr.mxu0 0.0
      %677 = vmatpush1.msra.mxu0 %v408
      %678 = vmatprep.subr.mxu0 0.0
      %679 = vmatpush1.msra.mxu0 %v409
      %680 = vmatprep.subr.mxu0 0.0
      %681 = vmatpush1.msra.mxu0 %v410
      %682 = vmatprep.subr.mxu0 0.0
      %683 = vmatpush1.msra.mxu0 %v411
      %684 = vmatprep.subr.mxu0 0.0
      %685 = vmatpush1.msra.mxu0 %v412
      %686 = vmatprep.subr.mxu0 0.0
      %687 = vmatpush1.msra.mxu0 %v413
      %688 = vmatprep.subr.mxu0 0.0
      %689 = vmatpush1.msra.mxu0 %v414
      %690 = vmatprep.subr.mxu0 0.0
      %691 = vmatpush1.msra.mxu0 %v415
      %692 = vmatprep.subr.mxu0 0.0
      %693 = vmatpush1.msra.mxu0 %v416
      %694 = vmatprep.subr.mxu0 0.0
      %695 = vmatpush1.msra.mxu0 %v417
      %696 = vmatprep.subr.mxu0 0.0
      %697 = vmatpush1.msra.mxu0 %v418
      %698 = vmatprep.subr.mxu0 0.0
      %699 = vmatpush1.msra.mxu0 %v419
      %700 = vmatprep.subr.mxu0 0.0
      %701 = vmatpush1.msra.mxu0 %v420
      %702 = vmatprep.subr.mxu0 0.0
      %703 = vmatpush1.msra.mxu0 %v421
      %704 = vmatprep.subr.mxu0 0.0
      %705 = vmatpush1.msra.mxu0 %v422
      %706 = vmatprep.subr.mxu0 0.0
      %707 = vmatpush1.msra.mxu0 %v423
      %708 = vmatprep.subr.mxu0 0.0
      %709 = vmatpush1.msra.mxu0 %v424
      %710 = vmatprep.subr.mxu0 0.0
      %711 = vmatpush1.msra.mxu0 %v425
      %712 = vmatprep.subr.mxu0 0.0
      %713 = vmatpush1.msra.mxu0 %v426
      %714 = vmatprep.mubr.f32.mxu0 %v500
      %715 = vmatmul.mubr.f32.gmra.mrb[0].mxu0 %v492
      %v716 = vpop.f32.mrb[0].mxu0
      %v717 = vadd.f32 %v647, %v716
      %v718 = vpop.f32.mrb[0].mxu0
      %719 = vdwg.mxu0
      %720 = vmatprep.subr.mxu0 0.0
      %721 = vmatpush1.msra.mxu0 %v427
      %722 = vmatprep.subr.mxu0 0.0
      %723 = vmatpush1.msra.mxu0 %v428
      %724 = vmatprep.subr.mxu0 0.0
      %725 = vmatpush1.msra.mxu0 %v429
      %726 = vmatprep.subr.mxu0 0.0
      %727 = vmatpush1.msra.mxu0 %v430
      %728 = vmatprep.subr.mxu0 0.0
      %729 = vmatpush1.msra.mxu0 %v431
      %730 = vmatprep.subr.mxu0 0.0
      %731 = vmatpush1.msra.mxu0 %v432
      %732 = vmatprep.subr.mxu0 0.0
      %733 = vmatpush1.msra.mxu0 %v433
      %734 = vmatprep.subr.mxu0 0.0
      %735 = vmatpush1.msra.mxu0 %v434
      %736 = vmatprep.subr.mxu0 0.0
      %737 = vmatpush1.msra.mxu0 %v435
      %738 = vmatprep.subr.mxu0 0.0
      %739 = vmatpush1.msra.mxu0 %v436
      %740 = vmatprep.subr.mxu0 0.0
      %741 = vmatpush1.msra.mxu0 %v437
      %742 = vmatprep.subr.mxu0 0.0
      %743 = vmatpush1.msra.mxu0 %v438
      %744 = vmatprep.subr.mxu0 0.0
      %745 = vmatpush1.msra.mxu0 %v439
      %746 = vmatprep.subr.mxu0 0.0
      %747 = vmatpush1.msra.mxu0 %v440
      %748 = vmatprep.subr.mxu0 0.0
      %749 = vmatpush1.msra.mxu0 %v441
      %750 = vmatprep.subr.mxu0 0.0
      %751 = vmatpush1.msra.mxu0 %v442
      %752 = vmatprep.subr.mxu0 0.0
      %753 = vmatpush1.msra.mxu0 %v443
      %754 = vmatprep.subr.mxu0 0.0
      %755 = vmatpush1.msra.mxu0 %v444
      %756 = vmatprep.subr.mxu0 0.0
      %757 = vmatpush1.msra.mxu0 %v445
      %758 = vmatprep.subr.mxu0 0.0
      %759 = vmatpush1.msra.mxu0 %v446
      %760 = vmatprep.subr.mxu0 0.0
      %761 = vmatpush1.msra.mxu0 %v447
      %762 = vmatprep.subr.mxu0 0.0
      %763 = vmatpush1.msra.mxu0 %v448
      %764 = vmatprep.subr.mxu0 0.0
      %765 = vmatpush1.msra.mxu0 %v449
      %766 = vmatprep.subr.mxu0 0.0
      %767 = vmatpush1.msra.mxu0 %v450
      %768 = vmatprep.subr.mxu0 0.0
      %769 = vmatpush1.msra.mxu0 %v451
      %770 = vmatprep.subr.mxu0 0.0
      %771 = vmatpush1.msra.mxu0 %v452
      %772 = vmatprep.subr.mxu0 0.0
      %773 = vmatpush1.msra.mxu0 %v453
      %774 = vmatprep.subr.mxu0 0.0
      %775 = vmatpush1.msra.mxu0 %v454
      %776 = vmatprep.subr.mxu0 0.0
      %777 = vmatpush1.msra.mxu0 %v455
      %778 = vmatprep.subr.mxu0 0.0
      %779 = vmatpush1.msra.mxu0 %v456
      %780 = vmatprep.subr.mxu0 0.0
      %781 = vmatpush1.msra.mxu0 %v457
      %782 = vmatprep.subr.mxu0 0.0
      %783 = vmatpush1.msra.mxu0 %v458
      %784 = vmatprep.mubr.f32.mxu0 %v501
      %785 = vmatmul.mubr.f32.gmra.mrb[0].mxu0 %v499
      %v786 = vpop.f32.mrb[0].mxu0
      %v787 = vadd.f32 %v717, %v786
      %v788 = vpop.f32.mrb[0].mxu0
      %789 = vdwg.mxu0
      %790 = vst [vmem:[#allocation10] sm:$0x3] %v787
    $region37: #{tpu_custom_call.1} parent=1 // pred_fallthru
      _
    // Predicated region
    $region38: #{tpu_custom_call.1} parent=1 // pred_check
      _
    $region39: #{tpu_custom_call.1} parent=1 // pred_check_branch
      %792 = sbr.rel (0) target = $region41
    $region40: #{tpu_custom_call.1} parent=1 // pred_region
      %s794 = ssub.s32 32, 32
      %795 = vsyncadd [#allocation6], %s794
      %s797 = sshll.u32 [#allocation10], 4
      %s798 = int_to_ptr.vmem [resolvable:$true] %s797
      %800 = dma.vmem_to_hbm [thread:$0]  %s798, 32, %s4, [#allocation6]
    $region41: #{tpu_custom_call.1} parent=1 // pred_fallthru
      _
    // Predicated region
    $region42: #{tpu_custom_call.1} parent=1 // pred_check
      _
    $region43: #{tpu_custom_call.1} parent=1 // pred_check_branch
      %802 = sbr.rel (0) target = $region45
    $region44: #{tpu_custom_call.1} parent=1 // pred_region
      %803 = dma.done [#allocation6], 32
    $region45: #{tpu_custom_call.1} parent=1 // pred_fallthru
      _
    %804 = vsyncpa [#allocation5], 1
    %805 = vsyncpa [#allocation8], 1
    %806 = vsyncpa [#allocation6], 1

</llo_original>
